<compile_context>
chip_gen: v5e
topology: v5e:2x2
jax: 0.10.0
libtpu: 0.0.40
codegen_flags: <defaults>
</compile_context>

<pallas_src>
import jax
import jax.numpy as jnp
from jax.experimental import pallas as pl
from jax.experimental.pallas import tpu as pltpu


def vq_kernel(x_ref, ekd_ref, edk_ref, half_esq_ref, q_ref, ids_ref, sse_ref):
    x = x_ref[...]                   # (D, T) activations in their native dtype
    x_f32 = x.astype(jnp.float32)    # for the exact SSE / commit loss
    x_bf16 = x.astype(jnp.bfloat16)  # MXU-native scores operand
    e_kd = ekd_ref[...]              # (K, D) bf16 codebook (score orientation)
    e_dk = edk_ref[...]              # (D, K) f32 codebook (gather orientation)
    half_esq = half_esq_ref[...]     # (K, 1) f32 0.5 * ||e_k||^2

    # l2 knn scores up to a per-query constant and a uniform 2x scale:
    #   argmax_k (2 e_k.x - ||e_k||^2 - ||x||^2) == argmax_k (e_k.x - 0.5||e_k||^2)
    scores = jnp.dot(e_kd, x_bf16, preferred_element_type=jnp.float32) - half_esq  # (K, T)

    K = scores.shape[0]
    iota = jax.lax.broadcasted_iota(jnp.int32, scores.shape, 0)    # (K, T)
    max_s = jnp.max(scores, axis=0, keepdims=True)                 # (1, T)
    # first index attaining the max (matches torch argmax/topk tie behaviour)
    ids = jnp.min(jnp.where(scores >= max_s, iota, K), axis=0, keepdims=True)  # (1, T)

    # gather via one-hot matmul (MXU friendly, f32 so the rows stay exact);
    # result is already in (D, T) = NCHW order
    onehot = (iota == ids).astype(jnp.float32)                     # (K, T)
    q = jnp.dot(e_dk, onehot, preferred_element_type=jnp.float32)  # (D, T)

    q_ref[...] = q.astype(q_ref.dtype)
    ids_ref[...] = ids                                             # lane-dense int32 store

    diff = x_f32 - q
    sse_ref[...] = jnp.sum(diff * diff, keepdims=True)             # (1, 1) per-tile partial


def _pick_tile_hw(hw: int, batch: int) -> int:
    """Largest lane-dense spatial tile (multiple of 128, <= 2048) dividing H*W.

    When batch == 1, prefer a tile that yields >= 2 spatial tiles so both v7x
    TensorCores have work to shard across the "parallel" grid axes.
    """
    candidates = [t for t in (2048, 1536, 1024, 768, 512, 384, 256, 128) if hw % t == 0]
    if not candidates:
        return hw  # full spatial extent is always a legal (if masked) block
    if batch == 1:
        for t in candidates:
            if hw // t >= 2:
                return t
    return candidates[0]


def vq_forward(x_nchw, embed, *, tile_hw=None):
    """Pallas implementation of VQModule.forward (eval) for 4-D NCHW input."""
    B, C, H, W = x_nchw.shape
    K, D = embed.shape
    assert C == D
    assert H == W, "torch module's transpose/view round-trip assumes H == W"
    HW = H * W
    if tile_hw is None:
        tile_hw = _pick_tile_hw(HW, B)
    assert HW % tile_hw == 0
    n_hw_tiles = HW // tile_hw

    x_bdhw = x_nchw.reshape(B, D, HW)               # free reshape, native dtype (no HBM copy)
    embed_f32 = embed.astype(jnp.float32)           # (K, D)
    embed_bf16 = embed_f32.astype(jnp.bfloat16)     # (K, D) scores operand (MXU native)
    embed_t = embed_f32.T                           # (D, K) f32 gather operand (exact rows)
    half_esq = 0.5 * jnp.sum(embed_f32 * embed_f32, axis=1, keepdims=True)   # (K, 1)

    q_bdhw, ids_b1hw, sse = pl.pallas_call(
        vq_kernel,
        out_shape=(
            jax.ShapeDtypeStruct((B, D, HW), jnp.float32),
            jax.ShapeDtypeStruct((B, 1, HW), jnp.int32),
            jax.ShapeDtypeStruct((B, n_hw_tiles, 1, 1), jnp.float32),
        ),
        grid_spec=pltpu.PrefetchScalarGridSpec(
            num_scalar_prefetch=0,
            grid=(B, n_hw_tiles),
            in_specs=[
                pl.BlockSpec((None, D, tile_hw), lambda b, j: (b, 0, j)),
                pl.BlockSpec((K, D), lambda b, j: (0, 0)),
                pl.BlockSpec((D, K), lambda b, j: (0, 0)),
                pl.BlockSpec((K, 1), lambda b, j: (0, 0)),
            ],
            out_specs=[
                pl.BlockSpec((None, D, tile_hw), lambda b, j: (b, 0, j)),
                pl.BlockSpec((None, 1, tile_hw), lambda b, j: (b, 0, j)),
                pl.BlockSpec((None, None, 1, 1), lambda b, j: (b, j, 0, 0)),
            ],
        ),
        compiler_params=pltpu.CompilerParams(
            dimension_semantics=("parallel", "parallel")),  # per-block SSE partials -> no accumulator
    )(x_bdhw, embed_bf16, embed_t, half_esq)

    # quantized[b, :, y, x] = embed[nearest(input[b, :, y, x])]  (already NCHW, free reshape)
    quantized = q_bdhw.reshape(B, D, H, W)

    # torch returns ids.view(b, h, w) of a (b, w, h)-ordered flatten, i.e.
    # ids[b, p, q] = nearest code of input[b, :, q, p] (valid since H == W):
    ids_nat = ids_b1hw.reshape(B, H, W)          # ids_nat[b, y, x] for input[b, :, y, x]
    ids = jnp.transpose(ids_nat, (0, 2, 1))      # tiny int32 transpose to match torch

    commit_loss = jnp.sum(sse) / jnp.float32(B * C * H * W)

    # straight-through estimator: forward value equals `quantized`
    return quantized, commit_loss, ids


def vq_reference(x_nchw, embed):
    """Pure-JAX (f32) transliteration of the PyTorch forward, for verification."""
    B, C, H, W = x_nchw.shape
    flat = jnp.transpose(x_nchw, (0, 3, 2, 1)).reshape(-1, C)      # transpose(1,-1).reshape
    scores = (2.0 * flat @ embed.T
              - jnp.sum(embed * embed, axis=1)[None, :]
              - jnp.sum(flat * flat, axis=1)[:, None])
    ids_flat = jnp.argmax(scores, axis=1)
    ids = ids_flat.reshape(B, H, W)
    q = embed[ids]                                                 # F.embedding -> (B,H,W,C)
    quantized = jnp.transpose(q, (0, 3, 2, 1))                     # .transpose(1,-1)
    commit = jnp.mean((x_nchw - quantized) ** 2)
    return quantized, commit, ids


if __name__ == "__main__":
    emb_dim = 32     # D
    dict_size = 128  # K
    B, H, W = 2, 16, 16

    key = jax.random.PRNGKey(0)
    k_embed, k_x = jax.random.split(key)
    embed = jax.random.normal(k_embed, (dict_size, emb_dim), dtype=jnp.float32)
    x = jax.random.normal(k_x, (B, emb_dim, H, W), dtype=jnp.float32)

    quantized, commit_loss, ids = jax.block_until_ready(jax.jit(vq_forward)(x, embed))

    q_ref, loss_ref, ids_ref = vq_reference(x, embed)
    assert quantized.shape == (B, emb_dim, H, W)
    assert ids.shape == (B, H, W)
    assert ids.dtype == jnp.int32

    # (a) quantized must equal the codebook rows selected by the kernel's own ids
    #     (mirrors torch: F.embedding(ids, embed).transpose(1, -1)).
    q_lookup = jnp.transpose(embed[ids], (0, 3, 2, 1))
    assert jnp.allclose(quantized, q_lookup, atol=1e-5, rtol=1e-5)

    # (b) every chosen code is the (near-)nearest neighbour in f32.  The bf16
    #     scores matmul may legitimately flip exact near-ties, so allow a small
    #     distance slack relative to the true minimum.
    flat = jnp.transpose(x, (0, 2, 3, 1)).reshape(-1, emb_dim)       # row = x[b, :, h, w]
    ids_nat_flat = jnp.transpose(ids, (0, 2, 1)).reshape(-1)         # code of x[b, :, h, w]
    d_kernel = jnp.sum((flat - embed[ids_nat_flat]) ** 2, axis=1)
    d_best = jnp.min(jnp.sum((flat[:, None, :] - embed[None, :, :]) ** 2, axis=-1), axis=1)
    assert jnp.all(d_kernel <= d_best + 0.25 + 5e-3 * d_best)

    # (c) the vast majority of ids match the exact-f32 reference argmax, and
    #     wherever they match the quantized values match the reference too.
    match = ids == ids_ref
    assert float(jnp.mean(match)) >= 0.95
    mask = jnp.transpose(match, (0, 2, 1))[:, None, :, :]            # align to NCHW positions
    assert jnp.allclose(jnp.where(mask, quantized, 0.0),
                        jnp.where(mask, q_ref, 0.0), atol=1e-5, rtol=1e-5)

    # (d) commit loss matches the reference MSE (near-tie flips are negligible).
    assert jnp.allclose(commit_loss, loss_ref, atol=2e-3, rtol=2e-3)

    print("KERNEL_OK")
</pallas_src>

<mosaic_0001>
module attributes {stable_mosaic.version = 11 : i64} {
  func.func @vq_kernel(%arg0: i32, %arg1: i32, %arg2: memref<1x32x256xf32, #tpu.memory_space<vmem>>, %arg3: memref<128x32xbf16, #tpu.memory_space<vmem>>, %arg4: memref<32x128xf32, #tpu.memory_space<vmem>>, %arg5: memref<128x1xf32, #tpu.memory_space<vmem>>, %arg6: memref<1x32x256xf32, #tpu.memory_space<vmem>>, %arg7: memref<1x1x256xi32, #tpu.memory_space<vmem>>, %arg8: memref<1x1x1x1xf32, #tpu.memory_space<vmem>>) attributes {dimension_semantics = [#tpu.dimension_semantics<parallel>, #tpu.dimension_semantics<parallel>], iteration_bounds = array<i64: 2, 1>, scalar_prefetch = 0 : i64, scratch_operands = 0 : i64, tpu.core_type = #tpu.core_type<tc>, window_params = [{transform_indices = @transform_0, window_bounds = array<i64: 1, 32, 256>}, {pipeline_mode = #tpu.pipeline_mode<synchronous>, transform_indices = @transform_1, window_bounds = array<i64: 128, 32>}, {pipeline_mode = #tpu.pipeline_mode<synchronous>, transform_indices = @transform_2, window_bounds = array<i64: 32, 128>}, {pipeline_mode = #tpu.pipeline_mode<synchronous>, transform_indices = @transform_3, window_bounds = array<i64: 128, 1>}, {transform_indices = @transform_4, window_bounds = array<i64: 1, 32, 256>}, {transform_indices = @transform_5, window_bounds = array<i64: 1, 1, 256>}, {transform_indices = @transform_6, window_bounds = array<i64: 1, 1, 1, 1>}]} {
    %c0 = arith.constant 0 : index
    %c0_0 = arith.constant 0 : index
    %c0_1 = arith.constant 0 : index
    %0 = vector.load %arg2[%c0, %c0_0, %c0_1] : memref<1x32x256xf32, #tpu.memory_space<vmem>>, vector<1x32x256xf32>
    %1 = vector.shape_cast %0 : vector<1x32x256xf32> to vector<32x256xf32>
    %2 = arith.truncf %1 : vector<32x256xf32> to vector<32x256xbf16>
    %c0_2 = arith.constant 0 : index
    %c0_3 = arith.constant 0 : index
    %3 = vector.load %arg3[%c0_2, %c0_3] : memref<128x32xbf16, #tpu.memory_space<vmem>>, vector<128x32xbf16>
    %c0_4 = arith.constant 0 : index
    %c0_5 = arith.constant 0 : index
    %4 = vector.load %arg4[%c0_4, %c0_5] : memref<32x128xf32, #tpu.memory_space<vmem>>, vector<32x128xf32>
    %c0_6 = arith.constant 0 : index
    %c0_7 = arith.constant 0 : index
    %5 = vector.load %arg5[%c0_6, %c0_7] : memref<128x1xf32, #tpu.memory_space<vmem>>, vector<128x1xf32>
    %cst = arith.constant dense<0.000000e+00> : vector<128x256xf32>
    %6 = tpu.matmul %3, %2, %cst {dimension_numbers = #tpu.dot_dimension_numbers<[1], [0], [0], [1], [0, 0, 1, 1], [], []>} : vector<128x32xbf16>, vector<32x256xbf16>, vector<128x256xf32> -> vector<128x256xf32>
    %7 = vector.broadcast %5 : vector<128x1xf32> to vector<128x256xf32>
    %8 = arith.subf %6, %7 : vector<128x256xf32>
    %9 = tpu.iota {dimensions = array<i32: 0>} : vector<128x256xi32>
    %cst_8 = arith.constant dense<0xFF800000> : vector<256xf32>
    %10 = vector.multi_reduction <maximumf>, %8, %cst_8 [0] : vector<128x256xf32> to vector<256xf32>
    %11 = vector.shape_cast %10 : vector<256xf32> to vector<1x256xf32>
    %12 = vector.broadcast %11 : vector<1x256xf32> to vector<128x256xf32>
    %13 = arith.cmpf oge, %8, %12 : vector<128x256xf32>
    %c128_i32 = arith.constant 128 : i32
    %14 = vector.broadcast %c128_i32 : i32 to vector<128x256xi32>
    %15 = arith.select %13, %9, %14 : vector<128x256xi1>, vector<128x256xi32>
    %cst_9 = arith.constant dense<2147483647> : vector<256xi32>
    %16 = vector.multi_reduction <minsi>, %15, %cst_9 [0] : vector<128x256xi32> to vector<256xi32>
    %17 = vector.shape_cast %16 : vector<256xi32> to vector<1x256xi32>
    %18 = vector.broadcast %17 : vector<1x256xi32> to vector<128x256xi32>
    %19 = arith.cmpi eq, %9, %18 : vector<128x256xi32>
    %20 = arith.extui %19 : vector<128x256xi1> to vector<128x256xi32>
    %21 = arith.sitofp %20 : vector<128x256xi32> to vector<128x256xf32>
    %cst_10 = arith.constant dense<0.000000e+00> : vector<32x256xf32>
    %22 = tpu.matmul %4, %21, %cst_10 {dimension_numbers = #tpu.dot_dimension_numbers<[1], [0], [0], [1], [0, 0, 1, 1], [], []>} : vector<32x128xf32>, vector<128x256xf32>, vector<32x256xf32> -> vector<32x256xf32>
    %c0_11 = arith.constant 0 : index
    %c0_12 = arith.constant 0 : index
    %c0_13 = arith.constant 0 : index
    %23 = vector.load %arg6[%c0_11, %c0_12, %c0_13] : memref<1x32x256xf32, #tpu.memory_space<vmem>>, vector<1x32x256xf32>
    %24 = vector.shape_cast %23 : vector<1x32x256xf32> to vector<32x256xf32>
    %25 = vector.shape_cast %22 : vector<32x256xf32> to vector<1x32x256xf32>
    tpu.vector_store %arg6[%c0_11, %c0_12, %c0_13], %25 {strides = array<i32>} : memref<1x32x256xf32, #tpu.memory_space<vmem>>, vector<1x32x256xf32>,
    %c0_14 = arith.constant 0 : index
    %c0_15 = arith.constant 0 : index
    %c0_16 = arith.constant 0 : index
    %26 = vector.load %arg7[%c0_14, %c0_15, %c0_16] : memref<1x1x256xi32, #tpu.memory_space<vmem>>, vector<1x1x256xi32>
    %27 = vector.shape_cast %26 : vector<1x1x256xi32> to vector<1x256xi32>
    %28 = vector.shape_cast %17 : vector<1x256xi32> to vector<1x1x256xi32>
    tpu.vector_store %arg7[%c0_14, %c0_15, %c0_16], %28 {strides = array<i32>} : memref<1x1x256xi32, #tpu.memory_space<vmem>>, vector<1x1x256xi32>,
    %29 = arith.subf %1, %22 : vector<32x256xf32>
    %30 = arith.mulf %29, %29 : vector<32x256xf32>
    %31 = vector.shape_cast %30 : vector<32x256xf32> to vector<1x32x256xf32>
    %cst_17 = arith.constant dense<0.000000e+00> : vector<1xf32>
    %32 = vector.multi_reduction <add>, %31, %cst_17 [1, 2] : vector<1x32x256xf32> to vector<1xf32>
    %33 = vector.shape_cast %32 : vector<1xf32> to vector<1x1x1xf32>
    %34 = vector.extract %33[0, 0, 0] : f32 from vector<1x1x1xf32>
    %35 = vector.broadcast %34 : f32 to vector<1x1xf32>
    %c0_18 = arith.constant 0 : index
    %c0_19 = arith.constant 0 : index
    %c0_20 = arith.constant 0 : index
    %c0_21 = arith.constant 0 : index
    %36 = vector.load %arg8[%c0_18, %c0_19, %c0_20, %c0_21] : memref<1x1x1x1xf32, #tpu.memory_space<vmem>>, vector<1x1x1x1xf32>
    %37 = vector.shape_cast %36 : vector<1x1x1x1xf32> to vector<1x1xf32>
    %38 = vector.shape_cast %35 : vector<1x1xf32> to vector<1x1x1x1xf32>
    tpu.vector_store %arg8[%c0_18, %c0_19, %c0_20, %c0_21], %38 {strides = array<i32>} : memref<1x1x1x1xf32, #tpu.memory_space<vmem>>, vector<1x1x1x1xf32>,
    return
  }
  func.func @transform_0(%arg0: i32, %arg1: i32) -> (i32, i32, i32) {
    %c0_i32 = arith.constant 0 : i32
    %c0_i32_0 = arith.constant 0 : i32
    return %arg0, %c0_i32, %arg1 : i32, i32, i32
  }
  func.func @transform_1(%arg0: i32, %arg1: i32) -> (i32, i32) {
    %c0_i32 = arith.constant 0 : i32
    %c0_i32_0 = arith.constant 0 : i32
    %c0_i32_1 = arith.constant 0 : i32
    return %c0_i32, %c0_i32_0 : i32, i32
  }
  func.func @transform_2(%arg0: i32, %arg1: i32) -> (i32, i32) {
    %c0_i32 = arith.constant 0 : i32
    %c0_i32_0 = arith.constant 0 : i32
    %c0_i32_1 = arith.constant 0 : i32
    return %c0_i32, %c0_i32_0 : i32, i32
  }
  func.func @transform_3(%arg0: i32, %arg1: i32) -> (i32, i32) {
    %c0_i32 = arith.constant 0 : i32
    %c0_i32_0 = arith.constant 0 : i32
    %c0_i32_1 = arith.constant 0 : i32
    return %c0_i32, %c0_i32_0 : i32, i32
  }
  func.func @transform_4(%arg0: i32, %arg1: i32) -> (i32, i32, i32) {
    %c0_i32 = arith.constant 0 : i32
    %c0_i32_0 = arith.constant 0 : i32
    return %arg0, %c0_i32, %arg1 : i32, i32, i32
  }
  func.func @transform_5(%arg0: i32, %arg1: i32) -> (i32, i32, i32) {
    %c0_i32 = arith.constant 0 : i32
    %c0_i32_0 = arith.constant 0 : i32
    return %arg0, %c0_i32, %arg1 : i32, i32, i32
  }
  func.func @transform_6(%arg0: i32, %arg1: i32) -> (i32, i32, i32, i32) {
    %c0_i32 = arith.constant 0 : i32
    %c0_i32_0 = arith.constant 0 : i32
    %c0_i32_1 = arith.constant 0 : i32
    return %arg0, %arg1, %c0_i32, %c0_i32_0 : i32, i32, i32, i32
  }
}

</mosaic_0001>

<llo_original>
// kernel: vq_forward.1
$region0: #{vq_forward.1}
  #allocation0 [shape = 'u32[]', space=smem, size = 0x4, offset = 0x4, fixed_abs, tag = 'smem constant byte address 0x4 - core index']
  #allocation1 [shape = 'u32[72,128]{1,0:T(1,128)}', space=vmem, size = 0x9000, scoped, tag = 'internal scratch']
  %s0 = inlined_call_operand.vmem [shape: f32[2,32,256], index: 0, kind: input, shape index: {}]
  %s1 = inlined_call_operand.vmem [shape: bf16[128,32], index: 1, kind: input, shape index: {}]
  %s2 = inlined_call_operand.vmem [shape: f32[32,128], index: 2, kind: input, shape index: {}]
  %s3 = inlined_call_operand.vmem [shape: f32[128,1], index: 3, kind: input, shape index: {}]
  %s4 = inlined_call_operand.vmem [shape: f32[2,32,256], index: 4, kind: output, shape index: {0}]
  %s5 = inlined_call_operand.vmem [shape: s32[2,1,256], index: 5, kind: output, shape index: {1}]
  %s6 = inlined_call_operand.vmem [shape: f32[2,1,1,1], index: 6, kind: output, shape index: {2}]
  %7 = xla_tuple %s4, %s5, %s6
  %s8 = sld [smem:[#allocation0]]
  $region65: #{vq_forward.1} parent=0
    _
  %s10 = ssub.s32 1, %s8
  %s11 = scalar_select 0, %s10, %s8
  loop: start=0, step=1, limit=4
  $region2: #{vq_forward.1} parent=0 // loop_pre_header
    _
  $region3: #{vq_forward.1} parent=0 // loop_header
    %s13 = sphi 0, %s17
    %p14 = scmp.ge.s32.totalorder %s13, 4
    %s20 = sphi 0, %s32
    %s21 = sphi 0, %s28
    %s22 = sphi 0, %s20
    %s23 = sphi 0, %s21
    %s24 = sphi 0, %s22
    %s25 = sphi 0, %s23
    %s37 = sphi 0, %s39
    %s40 = sphi 0, %s37
    %s41 = sphi 0, %s40
    %s57 = sphi 0, %s41
    %s61 = sphi 0, %s61
    %s63 = sphi 0, %s61
    %s64 = sphi 0, %s63
    %s78 = sphi 0, %s64
    %s82 = sphi 0, %s82
    %s84 = sphi 0, %s82
    %s85 = sphi 0, %s84
    %s99 = sphi 0, %s85
    %s103 = sphi 0, %s103
    %s105 = sphi 0, %s103
    %s106 = sphi 0, %s105
    %s120 = sphi 0, %s106
    %s128 = sphi 0, %s130
    %s131 = sphi 0, %s128
    %s132 = sphi 0, %s131
    %s148 = sphi 0, %s132
    %s156 = sphi 0, %s158
    %s159 = sphi 0, %s156
    %s160 = sphi 0, %s159
    %s176 = sphi 0, %s160
    %s184 = sphi 0, %s186
    %s187 = sphi 0, %s184
    %s188 = sphi 0, %s187
    %s204 = sphi 0, %s188
  $region4: #{vq_forward.1} parent=0 // loop_header_branch
    %16 = sbr.rel (%p14) target = $region8
  $region5: #{vq_forward.1} parent=0 // loop_body
    %s18 = ssub.s32 %s13, 1
    %s19 = ssub.s32 %s13, 2
    %s26 = sadd.s32 1, %s21
    %p27 = scmp.ge.s32.totalorder %s26, 1
    %s28 = scalar_select %p27, 0, %s26
    %s29 = sadd.s32 1, %s20
    %s30 = scalar_select %p27, %s29, %s20
    %p31 = scmp.ge.s32.totalorder %s30, 2
    %s32 = scalar_select %p31, 0, %s30
    %s33 = ssub.s32 %s20, %s32
    %s34 = ssub.s32 %s21, %s28
    %s35 = sor.u32 %s33, %s34
    %p36 = scmp.eq.s32.totalorder %s35, 0
    %s38 = sadd.s32 %s37, 1
    %s39 = scalar_select %p36, %s37, %s38
    %p42 = pneg %p36
    %p43 = scmp.eq.s32.totalorder %s13, 1
    %p44 = por %p42, %p43
    %p45 = scmp.ne.s32.totalorder %s37, %s40
    %p46 = scmp.eq.s32.totalorder %s13, 0
    %p47 = por %p45, %p46
    %p48 = scmp.ne.s32.totalorder %s37, %s40
    %p49 = scmp.eq.s32.totalorder %s18, 1
    %p50 = por %p48, %p49
    %p51 = scmp.ne.s32.totalorder %s40, %s41
    %p52 = scmp.eq.s32.totalorder %s18, 0
    %p53 = por %p51, %p52
    %p54 = scmp.ne.s32.totalorder %s40, %s41
    %p55 = scmp.eq.s32.totalorder %s19, 1
    %p56 = por %p54, %p55
    %p58 = scmp.ne.s32.totalorder %s41, %s57
    %p59 = scmp.eq.s32.totalorder %s19, 0
    %p60 = por %p58, %p59
    %s62 = sadd.s32 %s61, 1
    %p65 = scmp.eq.s32.totalorder %s13, 1
    %p66 = scmp.ne.s32.totalorder %s61, %s63
    %p67 = scmp.eq.s32.totalorder %s13, 0
    %p68 = por %p66, %p67
    %p69 = scmp.ne.s32.totalorder %s61, %s63
    %p70 = scmp.eq.s32.totalorder %s18, 1
    %p71 = por %p69, %p70
    %p72 = scmp.ne.s32.totalorder %s63, %s64
    %p73 = scmp.eq.s32.totalorder %s18, 0
    %p74 = por %p72, %p73
    %p75 = scmp.ne.s32.totalorder %s63, %s64
    %p76 = scmp.eq.s32.totalorder %s19, 1
    %p77 = por %p75, %p76
    %p79 = scmp.ne.s32.totalorder %s64, %s78
    %p80 = scmp.eq.s32.totalorder %s19, 0
    %p81 = por %p79, %p80
    %s83 = sadd.s32 %s82, 1
    %p86 = scmp.eq.s32.totalorder %s13, 1
    %p87 = scmp.ne.s32.totalorder %s82, %s84
    %p88 = scmp.eq.s32.totalorder %s13, 0
    %p89 = por %p87, %p88
    %p90 = scmp.ne.s32.totalorder %s82, %s84
    %p91 = scmp.eq.s32.totalorder %s18, 1
    %p92 = por %p90, %p91
    %p93 = scmp.ne.s32.totalorder %s84, %s85
    %p94 = scmp.eq.s32.totalorder %s18, 0
    %p95 = por %p93, %p94
    %p96 = scmp.ne.s32.totalorder %s84, %s85
    %p97 = scmp.eq.s32.totalorder %s19, 1
    %p98 = por %p96, %p97
    %p100 = scmp.ne.s32.totalorder %s85, %s99
    %p101 = scmp.eq.s32.totalorder %s19, 0
    %p102 = por %p100, %p101
    %s104 = sadd.s32 %s103, 1
    %p107 = scmp.eq.s32.totalorder %s13, 1
    %p108 = scmp.ne.s32.totalorder %s103, %s105
    %p109 = scmp.eq.s32.totalorder %s13, 0
    %p110 = por %p108, %p109
    %p111 = scmp.ne.s32.totalorder %s103, %s105
    %p112 = scmp.eq.s32.totalorder %s18, 1
    %p113 = por %p111, %p112
    %p114 = scmp.ne.s32.totalorder %s105, %s106
    %p115 = scmp.eq.s32.totalorder %s18, 0
    %p116 = por %p114, %p115
    %p117 = scmp.ne.s32.totalorder %s105, %s106
    %p118 = scmp.eq.s32.totalorder %s19, 1
    %p119 = por %p117, %p118
    %p121 = scmp.ne.s32.totalorder %s106, %s120
    %p122 = scmp.eq.s32.totalorder %s19, 0
    %p123 = por %p121, %p122
    %s124 = ssub.s32 %s20, %s32
    %s125 = ssub.s32 %s21, %s28
    %s126 = sor.u32 %s124, %s125
    %p127 = scmp.eq.s32.totalorder %s126, 0
    %s129 = sadd.s32 %s128, 1
    %s130 = scalar_select %p127, %s128, %s129
    %p133 = pneg %p127
    %p134 = scmp.eq.s32.totalorder %s13, 1
    %p135 = por %p133, %p134
    %p136 = scmp.ne.s32.totalorder %s128, %s131
    %p137 = scmp.eq.s32.totalorder %s13, 0
    %p138 = por %p136, %p137
    %p139 = scmp.ne.s32.totalorder %s128, %s131
    %p140 = scmp.eq.s32.totalorder %s18, 1
    %p141 = por %p139, %p140
    %p142 = scmp.ne.s32.totalorder %s131, %s132
    %p143 = scmp.eq.s32.totalorder %s18, 0
    %p144 = por %p142, %p143
    %p145 = scmp.ne.s32.totalorder %s131, %s132
    %p146 = scmp.eq.s32.totalorder %s19, 1
    %p147 = por %p145, %p146
    %p149 = scmp.ne.s32.totalorder %s132, %s148
    %p150 = scmp.eq.s32.totalorder %s19, 0
    %p151 = por %p149, %p150
    %s152 = ssub.s32 %s20, %s32
    %s153 = ssub.s32 %s21, %s28
    %s154 = sor.u32 %s152, %s153
    %p155 = scmp.eq.s32.totalorder %s154, 0
    %s157 = sadd.s32 %s156, 1
    %s158 = scalar_select %p155, %s156, %s157
    %p161 = pneg %p155
    %p162 = scmp.eq.s32.totalorder %s13, 1
    %p163 = por %p161, %p162
    %p164 = scmp.ne.s32.totalorder %s156, %s159
    %p165 = scmp.eq.s32.totalorder %s13, 0
    %p166 = por %p164, %p165
    %p167 = scmp.ne.s32.totalorder %s156, %s159
    %p168 = scmp.eq.s32.totalorder %s18, 1
    %p169 = por %p167, %p168
    %p170 = scmp.ne.s32.totalorder %s159, %s160
    %p171 = scmp.eq.s32.totalorder %s18, 0
    %p172 = por %p170, %p171
    %p173 = scmp.ne.s32.totalorder %s159, %s160
    %p174 = scmp.eq.s32.totalorder %s19, 1
    %p175 = por %p173, %p174
    %p177 = scmp.ne.s32.totalorder %s160, %s176
    %p178 = scmp.eq.s32.totalorder %s19, 0
    %p179 = por %p177, %p178
    %s180 = ssub.s32 %s20, %s32
    %s181 = ssub.s32 %s21, %s28
    %s182 = sor.u32 %s180, %s181
    %p183 = scmp.eq.s32.totalorder %s182, 0
    %s185 = sadd.s32 %s184, 1
    %s186 = scalar_select %p183, %s184, %s185
    %p189 = pneg %p183
    %p190 = scmp.eq.s32.totalorder %s13, 1
    %p191 = por %p189, %p190
    %p192 = scmp.ne.s32.totalorder %s184, %s187
    %p193 = scmp.eq.s32.totalorder %s13, 0
    %p194 = por %p192, %p193
    %p195 = scmp.ne.s32.totalorder %s184, %s187
    %p196 = scmp.eq.s32.totalorder %s18, 1
    %p197 = por %p195, %p196
    %p198 = scmp.ne.s32.totalorder %s187, %s188
    %p199 = scmp.eq.s32.totalorder %s18, 0
    %p200 = por %p198, %p199
    %p201 = scmp.ne.s32.totalorder %s187, %s188
    %p202 = scmp.eq.s32.totalorder %s19, 1
    %p203 = por %p201, %p202
    %p205 = scmp.ne.s32.totalorder %s188, %s204
    %p206 = scmp.eq.s32.totalorder %s19, 0
    %p207 = por %p205, %p206
    %p208 = scmp.le.s32.totalorder 1, %s13
    %p209 = scmp.lt.s32.totalorder %s13, 3
    %p210 = pnand %p208, %p209
    %p211 = pneg %p210
    // Predicated region
    $region9: #{vq_forward.1} parent=5 // pred_check
      _
    $region10: #{vq_forward.1} parent=5 // pred_check_branch
      %213 = sbr.rel (%p210) target = $region12
    $region11: #{vq_forward.1} parent=5 // pred_region
      %s214 = ssub.s32 %s13, 1
      // Predicated region
      $region13: #{vq_forward.1} parent=11 // pred_check
        %p215 = pneg %p74
      $region14: #{vq_forward.1} parent=11 // pred_check_branch
        %217 = sbr.rel (%p215) target = $region16
      $region15: #{vq_forward.1} parent=11 // pred_region
        _
      $region16: #{vq_forward.1} parent=11 // pred_fallthru
        _
      // Predicated region
      $region17: #{vq_forward.1} parent=11 // pred_check
        %p218 = pneg %p95
      $region18: #{vq_forward.1} parent=11 // pred_check_branch
        %220 = sbr.rel (%p218) target = $region20
      $region19: #{vq_forward.1} parent=11 // pred_region
        _
      $region20: #{vq_forward.1} parent=11 // pred_fallthru
        _
      // Predicated region
      $region21: #{vq_forward.1} parent=11 // pred_check
        %p221 = pneg %p116
      $region22: #{vq_forward.1} parent=11 // pred_check_branch
        %223 = sbr.rel (%p221) target = $region24
      $region23: #{vq_forward.1} parent=11 // pred_region
        _
      $region24: #{vq_forward.1} parent=11 // pred_fallthru
        _
    $region12: #{vq_forward.1} parent=5 // pred_fallthru
      _
    %p224 = scmp.lt.s32.totalorder %s13, 2
    // Predicated region
    $region25: #{vq_forward.1} parent=5 // pred_check
      %p225 = pneg %p224
    $region26: #{vq_forward.1} parent=5 // pred_check_branch
      %227 = sbr.rel (%p225) target = $region28
    $region27: #{vq_forward.1} parent=5 // pred_region
      // Predicated region
      $region29: #{vq_forward.1} parent=27 // pred_check
        %p228 = pneg %p47
      $region30: #{vq_forward.1} parent=27 // pred_check_branch
        %230 = sbr.rel (%p228) target = $region32
      $region31: #{vq_forward.1} parent=27 // pred_region
        %s231 = smul.u32 2, %s21
        %p232 = scmp.lt.s32.totalorder %s20, 1
        %s233 = scalar_select %p232, %s20, 1
        %p234 = scmp.lt.s32.totalorder %s231, 1
        %s235 = scalar_select %p234, %s231, 1
        %s236 = smul.addr %s233, 8
        %s237 = sadd.s32 %s235, %s236
        %s238 = smul.addr %s237, 8
        %s239 = scalar_lea.vmem %s0, %s238
        %s240 = smul.u32 2, %s21
      $region32: #{vq_forward.1} parent=27 // pred_fallthru
        _
    $region28: #{vq_forward.1} parent=5 // pred_fallthru
      _
    %p241 = scmp.le.s32.totalorder 1, %s13
    %p242 = scmp.lt.s32.totalorder %s13, 3
    %p243 = pnand %p241, %p242
    %p244 = pneg %p243
    // Predicated region
    $region33: #{vq_forward.1} parent=5 // pred_check
      _
    $region34: #{vq_forward.1} parent=5 // pred_check_branch
      %246 = sbr.rel (%p243) target = $region36
    $region35: #{vq_forward.1} parent=5 // pred_region
      %s247 = ssub.s32 %s13, 1
      %s248 = smul.u32 2, %s23
      %p249 = scmp.lt.s32.totalorder %s22, 1
      %s250 = scalar_select %p249, %s22, 1
      %p251 = scmp.lt.s32.totalorder %s248, 1
      %s252 = scalar_select %p251, %s248, 1
      %s253 = smul.addr %s250, 8
      %s254 = sadd.s32 %s252, %s253
      %s255 = smul.addr %s254, 8
      %s256 = scalar_lea.vmem %s0, %s255
      %p257 = pneg %p53
      %p258 = pneg %p50
      %p259 = pneg %p74
      %p260 = pneg %p71
      %p261 = pneg %p95
      %p262 = pneg %p92
      %p263 = pneg %p116
      %p264 = pneg %p113
      %p265 = pneg %p144
      %p266 = pneg %p141
      %s267 = smul.u32 2, %s23
      %p268 = scmp.lt.s32.totalorder %s22, 1
      %s269 = scalar_select %p268, %s22, 1
      %p270 = scmp.lt.s32.totalorder %s267, 1
      %s271 = scalar_select %p270, %s267, 1
      %s272 = smul.addr %s269, 8
      %s273 = sadd.s32 %s271, %s272
      %s274 = smul.addr %s273, 8
      %s275 = scalar_lea.vmem %s4, %s274
      %p276 = pneg %p172
      %p277 = pneg %p169
      %s278 = smul.u32 2, %s23
      %p279 = scmp.lt.s32.totalorder %s22, 1
      %s280 = scalar_select %p279, %s22, 1
      %p281 = scmp.lt.s32.totalorder %s278, 1
      %s282 = scalar_select %p281, %s278, 1
      %s283 = smul.addr %s280, 2
      %s284 = sadd.s32 %s282, %s283
      %s285 = scalar_lea.vmem %s5, %s284
      %p286 = pneg %p200
      %p287 = pneg %p197
      %p288 = scmp.lt.s32.totalorder %s22, 1
      %s289 = scalar_select %p288, %s22, 1
      %p290 = scmp.lt.s32.totalorder %s23, 0
      %s291 = scalar_select %p290, %s23, 0
      %s292 = sadd.s32 %s291, %s289
      %s293 = scalar_lea.vmem %s6, %s292
      %s294 = smul.u32 2, %s23
      %p295 = scmp.lt.s32.totalorder %s22, 1
      %s296 = scalar_select %p295, %s22, 1
      %p297 = scmp.lt.s32.totalorder %s294, 1
      %s298 = scalar_select %p297, %s294, 1
      %s299 = smul.addr %s296, 8
      %s300 = sadd.s32 %s298, %s299
      %s301 = smul.addr %s300, 8
      %s302 = scalar_lea.vmem %s0, %s301
      %s303 = smul.u32 2, %s23
      %s304 = smul.u32 2, %s23
      %p305 = scmp.lt.s32.totalorder %s22, 1
      %s306 = scalar_select %p305, %s22, 1
      %p307 = scmp.lt.s32.totalorder %s304, 1
      %s308 = scalar_select %p307, %s304, 1
      %s309 = smul.addr %s306, 8
      %s310 = sadd.s32 %s308, %s309
      %s311 = smul.addr %s310, 8
      %s312 = scalar_lea.vmem %s4, %s311
      %s313 = smul.u32 2, %s23
      %s314 = smul.u32 2, %s23
      %p315 = scmp.lt.s32.totalorder %s22, 1
      %s316 = scalar_select %p315, %s22, 1
      %p317 = scmp.lt.s32.totalorder %s314, 1
      %s318 = scalar_select %p317, %s314, 1
      %s319 = smul.addr %s316, 2
      %s320 = sadd.s32 %s318, %s319
      %s321 = scalar_lea.vmem %s5, %s320
      %s322 = smul.u32 2, %s23
      %p323 = scmp.lt.s32.totalorder %s22, 1
      %s324 = scalar_select %p323, %s22, 1
      %p325 = scmp.lt.s32.totalorder %s23, 0
      %s326 = scalar_select %p325, %s23, 0
      %s327 = sadd.s32 %s326, %s324
      %s328 = scalar_lea.vmem %s6, %s327
      %v330 = vld [vmem:[%s302] sm:$0xff]
      %v331 = vld [vmem:[%s302 + $0x8] sm:$0xff]
      %v332 = vld [vmem:[%s302 + $0x10] sm:$0xff]
      %v333 = vld [vmem:[%s302 + $0x18] sm:$0xff]
      %v334 = vld [vmem:[%s302 + $0x20] sm:$0xff]
      %v335 = vld [vmem:[%s302 + $0x28] sm:$0xff]
      %v336 = vld [vmem:[%s302 + $0x30] sm:$0xff]
      %v337 = vld [vmem:[%s302 + $0x38] sm:$0xff]
      %v338 = vpack.c.bf16 %v332, %v330
      %v339 = vpack.c.bf16 %v333, %v331
      %v340 = vpack.c.bf16 %v336, %v334
      %v341 = vpack.c.bf16 %v337, %v335
      %v342 = vld [vmem:[%s1] sm:$0xf]
      %v343 = vld [vmem:[%s1 + $0x4] sm:$0xf]
      %v344 = vld [vmem:[%s1 + $0x8] sm:$0xf]
      %v345 = vld [vmem:[%s1 + $0xc] sm:$0xf]
      %v346 = vld [vmem:[%s1 + $0x10] sm:$0xf]
      %v347 = vld [vmem:[%s1 + $0x14] sm:$0xf]
      %v348 = vld [vmem:[%s1 + $0x18] sm:$0xf]
      %v349 = vld [vmem:[%s1 + $0x1c] sm:$0xf]
      %v350 = vld [vmem:[%s1 + $0x20] sm:$0xf]
      %v351 = vld [vmem:[%s1 + $0x24] sm:$0xf]
      %v352 = vld [vmem:[%s1 + $0x28] sm:$0xf]
      %v353 = vld [vmem:[%s1 + $0x2c] sm:$0xf]
      %v354 = vld [vmem:[%s1 + $0x30] sm:$0xf]
      %v355 = vld [vmem:[%s1 + $0x34] sm:$0xf]
      %v356 = vld [vmem:[%s1 + $0x38] sm:$0xf]
      %v357 = vld [vmem:[%s1 + $0x3c] sm:$0xf]
      %v358 = vld [vmem:[%s2] sm:$0xff]
      %v359 = vld [vmem:[%s2 + $0x8] sm:$0xff]
      %v360 = vld [vmem:[%s2 + $0x10] sm:$0xff]
      %v361 = vld [vmem:[%s2 + $0x18] sm:$0xff]
      %v362 = vld [vmem:[%s3] sm:$0xff]
      %v363 = vld [vmem:[%s3 + $0x8] sm:$0xff]
      %v364 = vld [vmem:[%s3 + $0x10] sm:$0xff]
      %v365 = vld [vmem:[%s3 + $0x18] sm:$0xff]
      %v366 = vld [vmem:[%s3 + $0x20] sm:$0xff]
      %v367 = vld [vmem:[%s3 + $0x28] sm:$0xff]
      %v368 = vld [vmem:[%s3 + $0x30] sm:$0xff]
      %v369 = vld [vmem:[%s3 + $0x38] sm:$0xff]
      %v370 = vld [vmem:[%s3 + $0x40] sm:$0xff]
      %v371 = vld [vmem:[%s3 + $0x48] sm:$0xff]
      %v372 = vld [vmem:[%s3 + $0x50] sm:$0xff]
      %v373 = vld [vmem:[%s3 + $0x58] sm:$0xff]
      %v374 = vld [vmem:[%s3 + $0x60] sm:$0xff]
      %v375 = vld [vmem:[%s3 + $0x68] sm:$0xff]
      %v376 = vld [vmem:[%s3 + $0x70] sm:$0xff]
      %v377 = vld [vmem:[%s3 + $0x78] sm:$0xff]
      %v394 = vunpack.c.l.b16 %v342
      %v395 = vunpack.c.l.b16 %v343
      %v396 = vunpack.c.l.b16 %v344
      %v397 = vunpack.c.l.b16 %v345
      %v398 = vunpack.c.l.b16 %v346
      %v399 = vunpack.c.l.b16 %v347
      %v400 = vunpack.c.l.b16 %v348
      %v401 = vunpack.c.l.b16 %v349
      %v402 = vunpack.c.l.b16 %v350
      %v403 = vunpack.c.l.b16 %v351
      %v404 = vunpack.c.l.b16 %v352
      %v405 = vunpack.c.l.b16 %v353
      %v406 = vunpack.c.l.b16 %v354
      %v407 = vunpack.c.l.b16 %v355
      %v408 = vunpack.c.l.b16 %v356
      %v409 = vunpack.c.l.b16 %v357
      %v410 = vpack.c.b16 %v395, %v394
      %v411 = vpack.c.b16 %v397, %v396
      %v412 = vpack.c.b16 %v399, %v398
      %v413 = vpack.c.b16 %v401, %v400
      %v414 = vpack.c.b16 %v403, %v402
      %v415 = vpack.c.b16 %v405, %v404
      %v416 = vpack.c.b16 %v407, %v406
      %v417 = vpack.c.b16 %v409, %v408
      %vm418 = vcmask 261120
      %v420 = vsel %vm418, %v410, 0
      %v423 = vsel %vm418, %v411, 0
      %v426 = vsel %vm418, %v412, 0
      %v429 = vsel %vm418, %v413, 0
      %v432 = vsel %vm418, %v414, 0
      %v435 = vsel %vm418, %v415, 0
      %v438 = vsel %vm418, %v416, 0
      %v441 = vsel %vm418, %v417, 0
      %443 = vmatpush.bf16.msra.mxu0 0
      %444 = vmatpush.bf16.msra.mxu0 0
      %445 = vmatpush.bf16.msra.mxu0 0
      %446 = vmatpush.bf16.msra.mxu0 0
      %447 = vmatpush.bf16.msra.mxu0 0
      %448 = vmatpush.bf16.msra.mxu0 0
      %449 = vmatpush.bf16.msra.mxu0 %v340
      %450 = vmatpush.bf16.msra.mxu0 %v338
      %451 = vmatmul.bf16.gmra.mxu0 %v420
      %v452 = vpop.f32.mrf.mxu0
      %v453 = vadd.f32 0.0, %v452
      %v454 = vpop.f32.mrf.mxu0
      %v455 = vadd.f32 0.0, %v454
      %456 = vmatmul.bf16.gmra.mxu0 %v423
      %v457 = vpop.f32.mrf.mxu0
      %v458 = vadd.f32 0.0, %v457
      %v459 = vpop.f32.mrf.mxu0
      %v460 = vadd.f32 0.0, %v459
      %461 = vmatmul.bf16.gmra.mxu0 %v426
      %v462 = vpop.f32.mrf.mxu0
      %v463 = vadd.f32 0.0, %v462
      %v464 = vpop.f32.mrf.mxu0
      %v465 = vadd.f32 0.0, %v464
      %466 = vmatmul.bf16.gmra.mxu0 %v429
      %v467 = vpop.f32.mrf.mxu0
      %v468 = vadd.f32 0.0, %v467
      %v469 = vpop.f32.mrf.mxu0
      %v470 = vadd.f32 0.0, %v469
      %471 = vmatmul.bf16.gmra.mxu0 %v432
      %v472 = vpop.f32.mrf.mxu0
      %v473 = vadd.f32 0.0, %v472
      %v474 = vpop.f32.mrf.mxu0
      %v475 = vadd.f32 0.0, %v474
      %476 = vmatmul.bf16.gmra.mxu0 %v435
      %v477 = vpop.f32.mrf.mxu0
      %v478 = vadd.f32 0.0, %v477
      %v479 = vpop.f32.mrf.mxu0
      %v480 = vadd.f32 0.0, %v479
      %481 = vmatmul.bf16.gmra.mxu0 %v438
      %v482 = vpop.f32.mrf.mxu0
      %v483 = vadd.f32 0.0, %v482
      %v484 = vpop.f32.mrf.mxu0
      %v485 = vadd.f32 0.0, %v484
      %486 = vmatmul.bf16.gmra.mxu0 %v441
      %v487 = vpop.f32.mrf.mxu0
      %v488 = vadd.f32 0.0, %v487
      %v489 = vpop.f32.mrf.mxu0
      %v490 = vadd.f32 0.0, %v489
      %491 = vdwg.mxu0
      %492 = vmatpush.bf16.msra.mxu0 0
      %493 = vmatpush.bf16.msra.mxu0 0
      %494 = vmatpush.bf16.msra.mxu0 0
      %495 = vmatpush.bf16.msra.mxu0 0
      %496 = vmatpush.bf16.msra.mxu0 0
      %497 = vmatpush.bf16.msra.mxu0 0
      %498 = vmatpush.bf16.msra.mxu0 %v341
      %499 = vmatpush.bf16.msra.mxu0 %v339
      %500 = vmatmul.bf16.gmra.mxu0 %v420
      %v501 = vpop.f32.mrf.mxu0
      %v502 = vadd.f32 0.0, %v501
      %v503 = vpop.f32.mrf.mxu0
      %v504 = vadd.f32 0.0, %v503
      %505 = vmatmul.bf16.gmra.mxu0 %v423
      %v506 = vpop.f32.mrf.mxu0
      %v507 = vadd.f32 0.0, %v506
      %v508 = vpop.f32.mrf.mxu0
      %v509 = vadd.f32 0.0, %v508
      %510 = vmatmul.bf16.gmra.mxu0 %v426
      %v511 = vpop.f32.mrf.mxu0
      %v512 = vadd.f32 0.0, %v511
      %v513 = vpop.f32.mrf.mxu0
      %v514 = vadd.f32 0.0, %v513
      %515 = vmatmul.bf16.gmra.mxu0 %v429
      %v516 = vpop.f32.mrf.mxu0
      %v517 = vadd.f32 0.0, %v516
      %v518 = vpop.f32.mrf.mxu0
      %v519 = vadd.f32 0.0, %v518
      %520 = vmatmul.bf16.gmra.mxu0 %v432
      %v521 = vpop.f32.mrf.mxu0
      %v522 = vadd.f32 0.0, %v521
      %v523 = vpop.f32.mrf.mxu0
      %v524 = vadd.f32 0.0, %v523
      %525 = vmatmul.bf16.gmra.mxu0 %v435
      %v526 = vpop.f32.mrf.mxu0
      %v527 = vadd.f32 0.0, %v526
      %v528 = vpop.f32.mrf.mxu0
      %v529 = vadd.f32 0.0, %v528
      %530 = vmatmul.bf16.gmra.mxu0 %v438
      %v531 = vpop.f32.mrf.mxu0
      %v532 = vadd.f32 0.0, %v531
      %v533 = vpop.f32.mrf.mxu0
      %v534 = vadd.f32 0.0, %v533
      %535 = vmatmul.bf16.gmra.mxu0 %v441
      %v536 = vpop.f32.mrf.mxu0
      %v537 = vadd.f32 0.0, %v536
      %v538 = vpop.f32.mrf.mxu0
      %v539 = vadd.f32 0.0, %v538
      %540 = vdwg.mxu0
      %542 = vset.pattern.permute.xlu0 0
      %543 = vperm.xlu0 %542, %v362
      %v544 = vpop.permute.xlu0 %543
      %547 = vset.pattern.permute.xlu0 0
      %548 = vperm.xlu0 %547, %v363
      %v549 = vpop.permute.xlu0 %548
      %552 = vset.pattern.permute.xlu0 0
      %553 = vperm.xlu0 %552, %v364
      %v554 = vpop.permute.xlu0 %553
      %557 = vset.pattern.permute.xlu0 0
      %558 = vperm.xlu0 %557, %v365
      %v559 = vpop.permute.xlu0 %558
      %562 = vset.pattern.permute.xlu0 0
      %563 = vperm.xlu0 %562, %v366
      %v564 = vpop.permute.xlu0 %563
      %567 = vset.pattern.permute.xlu0 0
      %568 = vperm.xlu0 %567, %v367
      %v569 = vpop.permute.xlu0 %568
      %572 = vset.pattern.permute.xlu0 0
      %573 = vperm.xlu0 %572, %v368
      %v574 = vpop.permute.xlu0 %573
      %577 = vset.pattern.permute.xlu0 0
      %578 = vperm.xlu0 %577, %v369
      %v579 = vpop.permute.xlu0 %578
      %582 = vset.pattern.permute.xlu0 0
      %583 = vperm.xlu0 %582, %v370
      %v584 = vpop.permute.xlu0 %583
      %587 = vset.pattern.permute.xlu0 0
      %588 = vperm.xlu0 %587, %v371
      %v589 = vpop.permute.xlu0 %588
      %592 = vset.pattern.permute.xlu0 0
      %593 = vperm.xlu0 %592, %v372
      %v594 = vpop.permute.xlu0 %593
      %597 = vset.pattern.permute.xlu0 0
      %598 = vperm.xlu0 %597, %v373
      %v599 = vpop.permute.xlu0 %598
      %602 = vset.pattern.permute.xlu0 0
      %603 = vperm.xlu0 %602, %v374
      %v604 = vpop.permute.xlu0 %603
      %607 = vset.pattern.permute.xlu0 0
      %608 = vperm.xlu0 %607, %v375
      %v609 = vpop.permute.xlu0 %608
      %612 = vset.pattern.permute.xlu0 0
      %613 = vperm.xlu0 %612, %v376
      %v614 = vpop.permute.xlu0 %613
      %617 = vset.pattern.permute.xlu0 0
      %618 = vperm.xlu0 %617, %v377
      %v619 = vpop.permute.xlu0 %618
      %v621 = vsub.f32 %v453, %v544
      %v622 = vsub.f32 %v502, %v544
      %v623 = vsub.f32 %v455, %v549
      %v624 = vsub.f32 %v504, %v549
      %v625 = vsub.f32 %v458, %v554
      %v626 = vsub.f32 %v507, %v554
      %v627 = vsub.f32 %v460, %v559
      %v628 = vsub.f32 %v509, %v559
      %v629 = vsub.f32 %v463, %v564
      %v630 = vsub.f32 %v512, %v564
      %v631 = vsub.f32 %v465, %v569
      %v632 = vsub.f32 %v514, %v569
      %v633 = vsub.f32 %v468, %v574
      %v634 = vsub.f32 %v517, %v574
      %v635 = vsub.f32 %v470, %v579
      %v636 = vsub.f32 %v519, %v579
      %v637 = vsub.f32 %v473, %v584
      %v638 = vsub.f32 %v522, %v584
      %v639 = vsub.f32 %v475, %v589
      %v640 = vsub.f32 %v524, %v589
      %v641 = vsub.f32 %v478, %v594
      %v642 = vsub.f32 %v527, %v594
      %v643 = vsub.f32 %v480, %v599
      %v644 = vsub.f32 %v529, %v599
      %v645 = vsub.f32 %v483, %v604
      %v646 = vsub.f32 %v532, %v604
      %v647 = vsub.f32 %v485, %v609
      %v648 = vsub.f32 %v534, %v609
      %v649 = vsub.f32 %v488, %v614
      %v650 = vsub.f32 %v537, %v614
      %v651 = vsub.f32 %v490, %v619
      %v652 = vsub.f32 %v539, %v619
      %v653 = vlaneseq
      %v654 = vshrl.u32 %v653, 7
      %v655 = vadd.s32 %v654, 8
      %v656 = vadd.s32 %v654, 16
      %v657 = vadd.s32 %v654, 24
      %v658 = vadd.s32 %v654, 32
      %v659 = vadd.s32 %v654, 40
      %v660 = vadd.s32 %v654, 48
      %v661 = vadd.s32 %v654, 56
      %v662 = vadd.s32 %v654, 64
      %v663 = vadd.s32 %v654, 72
      %v664 = vadd.s32 %v654, 80
      %v665 = vadd.s32 %v654, 88
      %v666 = vadd.s32 %v654, 96
      %v667 = vadd.s32 %v654, 104
      %v668 = vadd.s32 %v654, 112
      %v669 = vadd.s32 %v654, 120
      %v670 = vmax.f32 %v621, %v625
      %v671 = vmax.f32 %v623, %v627
      %v672 = vmax.f32 %v670, %v629
      %v673 = vmax.f32 %v671, %v631
      %v674 = vmax.f32 %v672, %v633
      %v675 = vmax.f32 %v673, %v635
      %v676 = vmax.f32 %v674, %v637
      %v677 = vmax.f32 %v675, %v639
      %v678 = vmax.f32 %v676, %v641
      %v679 = vmax.f32 %v677, %v643
      %v680 = vmax.f32 %v678, %v645
      %v681 = vmax.f32 %v679, %v647
      %v682 = vmax.f32 %v680, %v649
      %v683 = vmax.f32 %v681, %v651
      %v684 = vmax.f32 %v682, %v683
      %v685 = vrot.slane %v684, 4
      %v686 = vmax.f32 %v684, %v685
      %v687 = vrot.slane %v686, 2
      %v688 = vmax.f32 %v686, %v687
      %v689 = vrot.slane %v688, 1
      %v690 = vmax.f32 %v688, %v689
      %v691 = vmax.f32 %v622, %v626
      %v692 = vmax.f32 %v624, %v628
      %v693 = vmax.f32 %v691, %v630
      %v694 = vmax.f32 %v692, %v632
      %v695 = vmax.f32 %v693, %v634
      %v696 = vmax.f32 %v694, %v636
      %v697 = vmax.f32 %v695, %v638
      %v698 = vmax.f32 %v696, %v640
      %v699 = vmax.f32 %v697, %v642
      %v700 = vmax.f32 %v698, %v644
      %v701 = vmax.f32 %v699, %v646
      %v702 = vmax.f32 %v700, %v648
      %v703 = vmax.f32 %v701, %v650
      %v704 = vmax.f32 %v702, %v652
      %v705 = vmax.f32 %v703, %v704
      %v706 = vrot.slane %v705, 4
      %v707 = vmax.f32 %v705, %v706
      %v708 = vrot.slane %v707, 2
      %v709 = vmax.f32 %v707, %v708
      %v710 = vrot.slane %v709, 1
      %v711 = vmax.f32 %v709, %v710
      %vm712 = vcmp.ge.f32.partialorder %v621, %v690
      %vm713 = vcmp.ge.f32.partialorder %v622, %v711
      %vm714 = vcmp.ge.f32.partialorder %v623, %v690
      %vm715 = vcmp.ge.f32.partialorder %v624, %v711
      %vm716 = vcmp.ge.f32.partialorder %v625, %v690
      %vm717 = vcmp.ge.f32.partialorder %v626, %v711
      %vm718 = vcmp.ge.f32.partialorder %v627, %v690
      %vm719 = vcmp.ge.f32.partialorder %v628, %v711
      %vm720 = vcmp.ge.f32.partialorder %v629, %v690
      %vm721 = vcmp.ge.f32.partialorder %v630, %v711
      %vm722 = vcmp.ge.f32.partialorder %v631, %v690
      %vm723 = vcmp.ge.f32.partialorder %v632, %v711
      %vm724 = vcmp.ge.f32.partialorder %v633, %v690
      %vm725 = vcmp.ge.f32.partialorder %v634, %v711
      %vm726 = vcmp.ge.f32.partialorder %v635, %v690
      %vm727 = vcmp.ge.f32.partialorder %v636, %v711
      %vm728 = vcmp.ge.f32.partialorder %v637, %v690
      %vm729 = vcmp.ge.f32.partialorder %v638, %v711
      %vm730 = vcmp.ge.f32.partialorder %v639, %v690
      %vm731 = vcmp.ge.f32.partialorder %v640, %v711
      %vm732 = vcmp.ge.f32.partialorder %v641, %v690
      %vm733 = vcmp.ge.f32.partialorder %v642, %v711
      %vm734 = vcmp.ge.f32.partialorder %v643, %v690
      %vm735 = vcmp.ge.f32.partialorder %v644, %v711
      %vm736 = vcmp.ge.f32.partialorder %v645, %v690
      %vm737 = vcmp.ge.f32.partialorder %v646, %v711
      %vm738 = vcmp.ge.f32.partialorder %v647, %v690
      %vm739 = vcmp.ge.f32.partialorder %v648, %v711
      %vm740 = vcmp.ge.f32.partialorder %v649, %v690
      %vm741 = vcmp.ge.f32.partialorder %v650, %v711
      %vm742 = vcmp.ge.f32.partialorder %v651, %v690
      %vm743 = vcmp.ge.f32.partialorder %v652, %v711
      %v744 = vsel %vm712, %v654, 128
      %v745 = vsel %vm713, %v654, 128
      %v746 = vsel %vm714, %v655, 128
      %v747 = vsel %vm715, %v655, 128
      %v748 = vsel %vm716, %v656, 128
      %v749 = vsel %vm717, %v656, 128
      %v750 = vsel %vm718, %v657, 128
      %v751 = vsel %vm719, %v657, 128
      %v752 = vsel %vm720, %v658, 128
      %v753 = vsel %vm721, %v658, 128
      %v754 = vsel %vm722, %v659, 128
      %v755 = vsel %vm723, %v659, 128
      %v756 = vsel %vm724, %v660, 128
      %v757 = vsel %vm725, %v660, 128
      %v758 = vsel %vm726, %v661, 128
      %v759 = vsel %vm727, %v661, 128
      %v760 = vsel %vm728, %v662, 128
      %v761 = vsel %vm729, %v662, 128
      %v762 = vsel %vm730, %v663, 128
      %v763 = vsel %vm731, %v663, 128
      %v764 = vsel %vm732, %v664, 128
      %v765 = vsel %vm733, %v664, 128
      %v766 = vsel %vm734, %v665, 128
      %v767 = vsel %vm735, %v665, 128
      %v768 = vsel %vm736, %v666, 128
      %v769 = vsel %vm737, %v666, 128
      %v770 = vsel %vm738, %v667, 128
      %v771 = vsel %vm739, %v667, 128
      %v772 = vsel %vm740, %v668, 128
      %v773 = vsel %vm741, %v668, 128
      %v774 = vsel %vm742, %v669, 128
      %v775 = vsel %vm743, %v669, 128
      %vm776 = vcmp.lt.s32.totalorder %v744, %v748
      %v777 = vsel %vm776, %v744, %v748
      %vm778 = vcmp.lt.s32.totalorder %v746, %v750
      %v779 = vsel %vm778, %v746, %v750
      %vm780 = vcmp.lt.s32.totalorder %v777, %v752
      %v781 = vsel %vm780, %v777, %v752
      %vm782 = vcmp.lt.s32.totalorder %v779, %v754
      %v783 = vsel %vm782, %v779, %v754
      %vm784 = vcmp.lt.s32.totalorder %v781, %v756
      %v785 = vsel %vm784, %v781, %v756
      %vm786 = vcmp.lt.s32.totalorder %v783, %v758
      %v787 = vsel %vm786, %v783, %v758
      %vm788 = vcmp.lt.s32.totalorder %v785, %v760
      %v789 = vsel %vm788, %v785, %v760
      %vm790 = vcmp.lt.s32.totalorder %v787, %v762
      %v791 = vsel %vm790, %v787, %v762
      %vm792 = vcmp.lt.s32.totalorder %v789, %v764
      %v793 = vsel %vm792, %v789, %v764
      %vm794 = vcmp.lt.s32.totalorder %v791, %v766
      %v795 = vsel %vm794, %v791, %v766
      %vm796 = vcmp.lt.s32.totalorder %v793, %v768
      %v797 = vsel %vm796, %v793, %v768
      %vm798 = vcmp.lt.s32.totalorder %v795, %v770
      %v799 = vsel %vm798, %v795, %v770
      %vm800 = vcmp.lt.s32.totalorder %v797, %v772
      %v801 = vsel %vm800, %v797, %v772
      %vm802 = vcmp.lt.s32.totalorder %v799, %v774
      %v803 = vsel %vm802, %v799, %v774
      %vm804 = vcmp.lt.s32.totalorder %v801, %v803
      %v805 = vsel %vm804, %v801, %v803
      %v806 = vrot.slane %v805, 4
      %vm807 = vcmp.lt.s32.totalorder %v805, %v806
      %v808 = vsel %vm807, %v805, %v806
      %v809 = vrot.slane %v808, 2
      %vm810 = vcmp.lt.s32.totalorder %v808, %v809
      %v811 = vsel %vm810, %v808, %v809
      %v812 = vrot.slane %v811, 1
      %vm813 = vcmp.lt.s32.totalorder %v811, %v812
      %v814 = vsel %vm813, %v811, %v812
      %vm815 = vcmp.lt.s32.totalorder %v745, %v749
      %v816 = vsel %vm815, %v745, %v749
      %vm817 = vcmp.lt.s32.totalorder %v747, %v751
      %v818 = vsel %vm817, %v747, %v751
      %vm819 = vcmp.lt.s32.totalorder %v816, %v753
      %v820 = vsel %vm819, %v816, %v753
      %vm821 = vcmp.lt.s32.totalorder %v818, %v755
      %v822 = vsel %vm821, %v818, %v755
      %vm823 = vcmp.lt.s32.totalorder %v820, %v757
      %v824 = vsel %vm823, %v820, %v757
      %vm825 = vcmp.lt.s32.totalorder %v822, %v759
      %v826 = vsel %vm825, %v822, %v759
      %vm827 = vcmp.lt.s32.totalorder %v824, %v761
      %v828 = vsel %vm827, %v824, %v761
      %vm829 = vcmp.lt.s32.totalorder %v826, %v763
      %v830 = vsel %vm829, %v826, %v763
      %vm831 = vcmp.lt.s32.totalorder %v828, %v765
      %v832 = vsel %vm831, %v828, %v765
      %vm833 = vcmp.lt.s32.totalorder %v830, %v767
      %v834 = vsel %vm833, %v830, %v767
      %vm835 = vcmp.lt.s32.totalorder %v832, %v769
      %v836 = vsel %vm835, %v832, %v769
      %vm837 = vcmp.lt.s32.totalorder %v834, %v771
      %v838 = vsel %vm837, %v834, %v771
      %vm839 = vcmp.lt.s32.totalorder %v836, %v773
      %v840 = vsel %vm839, %v836, %v773
      %vm841 = vcmp.lt.s32.totalorder %v838, %v775
      %v842 = vsel %vm841, %v838, %v775
      %vm843 = vcmp.lt.s32.totalorder %v840, %v842
      %v844 = vsel %vm843, %v840, %v842
      %v845 = vrot.slane %v844, 4
      %vm846 = vcmp.lt.s32.totalorder %v844, %v845
      %v847 = vsel %vm846, %v844, %v845
      %v848 = vrot.slane %v847, 2
      %vm849 = vcmp.lt.s32.totalorder %v847, %v848
      %v850 = vsel %vm849, %v847, %v848
      %v851 = vrot.slane %v850, 1
      %vm852 = vcmp.lt.s32.totalorder %v850, %v851
      %v853 = vsel %vm852, %v850, %v851
      %vm854 = vcmp.eq.s32.totalorder %v654, %v814
      %vm855 = vcmp.eq.s32.totalorder %v654, %v853
      %vm856 = vcmp.eq.s32.totalorder %v655, %v814
      %vm857 = vcmp.eq.s32.totalorder %v655, %v853
      %vm858 = vcmp.eq.s32.totalorder %v656, %v814
      %vm859 = vcmp.eq.s32.totalorder %v656, %v853
      %vm860 = vcmp.eq.s32.totalorder %v657, %v814
      %vm861 = vcmp.eq.s32.totalorder %v657, %v853
      %vm862 = vcmp.eq.s32.totalorder %v658, %v814
      %vm863 = vcmp.eq.s32.totalorder %v658, %v853
      %vm864 = vcmp.eq.s32.totalorder %v659, %v814
      %vm865 = vcmp.eq.s32.totalorder %v659, %v853
      %vm866 = vcmp.eq.s32.totalorder %v660, %v814
      %vm867 = vcmp.eq.s32.totalorder %v660, %v853
      %vm868 = vcmp.eq.s32.totalorder %v661, %v814
      %vm869 = vcmp.eq.s32.totalorder %v661, %v853
      %vm870 = vcmp.eq.s32.totalorder %v662, %v814
      %vm871 = vcmp.eq.s32.totalorder %v662, %v853
      %vm872 = vcmp.eq.s32.totalorder %v663, %v814
      %vm873 = vcmp.eq.s32.totalorder %v663, %v853
      %vm874 = vcmp.eq.s32.totalorder %v664, %v814
      %vm875 = vcmp.eq.s32.totalorder %v664, %v853
      %vm876 = vcmp.eq.s32.totalorder %v665, %v814
      %vm877 = vcmp.eq.s32.totalorder %v665, %v853
      %vm878 = vcmp.eq.s32.totalorder %v666, %v814
      %vm879 = vcmp.eq.s32.totalorder %v666, %v853
      %vm880 = vcmp.eq.s32.totalorder %v667, %v814
      %vm881 = vcmp.eq.s32.totalorder %v667, %v853
      %vm882 = vcmp.eq.s32.totalorder %v668, %v814
      %vm883 = vcmp.eq.s32.totalorder %v668, %v853
      %vm884 = vcmp.eq.s32.totalorder %v669, %v814
      %vm885 = vcmp.eq.s32.totalorder %v669, %v853
      %v886 = vsel %vm854, 1, 0
      %v887 = vsel %vm855, 1, 0
      %v888 = vsel %vm856, 1, 0
      %v889 = vsel %vm857, 1, 0
      %v890 = vsel %vm858, 1, 0
      %v891 = vsel %vm859, 1, 0
      %v892 = vsel %vm860, 1, 0
      %v893 = vsel %vm861, 1, 0
      %v894 = vsel %vm862, 1, 0
      %v895 = vsel %vm863, 1, 0
      %v896 = vsel %vm864, 1, 0
      %v897 = vsel %vm865, 1, 0
      %v898 = vsel %vm866, 1, 0
      %v899 = vsel %vm867, 1, 0
      %v900 = vsel %vm868, 1, 0
      %v901 = vsel %vm869, 1, 0
      %v902 = vsel %vm870, 1, 0
      %v903 = vsel %vm871, 1, 0
      %v904 = vsel %vm872, 1, 0
      %v905 = vsel %vm873, 1, 0
      %v906 = vsel %vm874, 1, 0
      %v907 = vsel %vm875, 1, 0
      %v908 = vsel %vm876, 1, 0
      %v909 = vsel %vm877, 1, 0
      %v910 = vsel %vm878, 1, 0
      %v911 = vsel %vm879, 1, 0
      %v912 = vsel %vm880, 1, 0
      %v913 = vsel %vm881, 1, 0
      %v914 = vsel %vm882, 1, 0
      %v915 = vsel %vm883, 1, 0
      %v916 = vsel %vm884, 1, 0
      %v917 = vsel %vm885, 1, 0
      %v918 = vcvt.s32.f32 %v886
      %v919 = vcvt.s32.f32 %v887
      %v920 = vcvt.s32.f32 %v888
      %v921 = vcvt.s32.f32 %v889
      %v922 = vcvt.s32.f32 %v890
      %v923 = vcvt.s32.f32 %v891
      %v924 = vcvt.s32.f32 %v892
      %v925 = vcvt.s32.f32 %v893
      %v926 = vcvt.s32.f32 %v894
      %v927 = vcvt.s32.f32 %v895
      %v928 = vcvt.s32.f32 %v896
      %v929 = vcvt.s32.f32 %v897
      %v930 = vcvt.s32.f32 %v898
      %v931 = vcvt.s32.f32 %v899
      %v932 = vcvt.s32.f32 %v900
      %v933 = vcvt.s32.f32 %v901
      %v934 = vcvt.s32.f32 %v902
      %v935 = vcvt.s32.f32 %v903
      %v936 = vcvt.s32.f32 %v904
      %v937 = vcvt.s32.f32 %v905
      %v938 = vcvt.s32.f32 %v906
      %v939 = vcvt.s32.f32 %v907
      %v940 = vcvt.s32.f32 %v908
      %v941 = vcvt.s32.f32 %v909
      %v942 = vcvt.s32.f32 %v910
      %v943 = vcvt.s32.f32 %v911
      %v944 = vcvt.s32.f32 %v912
      %v945 = vcvt.s32.f32 %v913
      %v946 = vcvt.s32.f32 %v914
      %v947 = vcvt.s32.f32 %v915
      %v948 = vcvt.s32.f32 %v916
      %v949 = vcvt.s32.f32 %v917
      %950 = vmatpush.msra.mxu0 %v948
      %951 = vmatpush.msra.mxu0 %v946
      %952 = vmatpush.msra.mxu0 %v944
      %953 = vmatpush.msra.mxu0 %v942
      %954 = vmatpush.msra.mxu0 %v940
      %955 = vmatpush.msra.mxu0 %v938
      %956 = vmatpush.msra.mxu0 %v936
      %957 = vmatpush.msra.mxu0 %v934
      %958 = vmatpush.msra.mxu0 %v932
      %959 = vmatpush.msra.mxu0 %v930
      %960 = vmatpush.msra.mxu0 %v928
      %961 = vmatpush.msra.mxu0 %v926
      %962 = vmatpush.msra.mxu0 %v924
      %963 = vmatpush.msra.mxu0 %v922
      %964 = vmatpush.msra.mxu0 %v920
      %965 = vmatpush.msra.mxu0 %v918
      %966 = vmatmul.f32.gmra.mxu0 %v358
      %v967 = vpop.f32.mrf.mxu0
      %v968 = vadd.f32 0.0, %v967
      %969 = vmatmul.f32.gmra.mxu0 %v359
      %v970 = vpop.f32.mrf.mxu0
      %v971 = vadd.f32 0.0, %v970
      %972 = vmatmul.f32.gmra.mxu0 %v360
      %v973 = vpop.f32.mrf.mxu0
      %v974 = vadd.f32 0.0, %v973
      %975 = vmatmul.f32.gmra.mxu0 %v361
      %v976 = vpop.f32.mrf.mxu0
      %v977 = vadd.f32 0.0, %v976
      %978 = vdwg.mxu0
      %979 = vmatpush.msra.mxu0 %v949
      %980 = vmatpush.msra.mxu0 %v947
      %981 = vmatpush.msra.mxu0 %v945
      %982 = vmatpush.msra.mxu0 %v943
      %983 = vmatpush.msra.mxu0 %v941
      %984 = vmatpush.msra.mxu0 %v939
      %985 = vmatpush.msra.mxu0 %v937
      %986 = vmatpush.msra.mxu0 %v935
      %987 = vmatpush.msra.mxu0 %v933
      %988 = vmatpush.msra.mxu0 %v931
      %989 = vmatpush.msra.mxu0 %v929
      %990 = vmatpush.msra.mxu0 %v927
      %991 = vmatpush.msra.mxu0 %v925
      %992 = vmatpush.msra.mxu0 %v923
      %993 = vmatpush.msra.mxu0 %v921
      %994 = vmatpush.msra.mxu0 %v919
      %995 = vmatmul.f32.gmra.mxu0 %v358
      %v996 = vpop.f32.mrf.mxu0
      %v997 = vadd.f32 0.0, %v996
      %998 = vmatmul.f32.gmra.mxu0 %v359
      %v999 = vpop.f32.mrf.mxu0
      %v1000 = vadd.f32 0.0, %v999
      %1001 = vmatmul.f32.gmra.mxu0 %v360
      %v1002 = vpop.f32.mrf.mxu0
      %v1003 = vadd.f32 0.0, %v1002
      %1004 = vmatmul.f32.gmra.mxu0 %v361
      %v1005 = vpop.f32.mrf.mxu0
      %v1006 = vadd.f32 0.0, %v1005
      %1007 = vdwg.mxu0
      %1008 = vst [vmem:[%s312] sm:$0xff] %v968
      %1009 = vst [vmem:[%s312 + $0x8] sm:$0xff] %v997
      %1010 = vst [vmem:[%s312 + $0x10] sm:$0xff] %v971
      %1011 = vst [vmem:[%s312 + $0x18] sm:$0xff] %v1000
      %1012 = vst [vmem:[%s312 + $0x20] sm:$0xff] %v974
      %1013 = vst [vmem:[%s312 + $0x28] sm:$0xff] %v1003
      %1014 = vst [vmem:[%s312 + $0x30] sm:$0xff] %v977
      %1015 = vst [vmem:[%s312 + $0x38] sm:$0xff] %v1006
      %v1016 = vrot.slane %v853, 7
      %vm1017 = vcmask 1040384
      %v1018 = vsel %vm1017, %v814, %v1016
      %v1019 = vlaneseq
      %vm1020 = vcmp.ge.s32.totalorder %v1019, 0
      %vm1021 = vcmp.lt.s32.totalorder %v1019, 256
      %vm1022 = vmand %vm1020, %vm1021
      %1023 = vst.msk [vmem:[%s321] sm:$0x3] %vm1022, %v1018
      %v1024 = vsub.f32 %v330, %v968
      %v1025 = vsub.f32 %v331, %v997
      %v1026 = vsub.f32 %v332, %v971
      %v1027 = vsub.f32 %v333, %v1000
      %v1028 = vsub.f32 %v334, %v974
      %v1029 = vsub.f32 %v335, %v1003
      %v1030 = vsub.f32 %v336, %v977
      %v1031 = vsub.f32 %v337, %v1006
      %v1032 = vmul.f32 %v1024, %v1024
      %v1033 = vmul.f32 %v1025, %v1025
      %v1034 = vmul.f32 %v1026, %v1026
      %v1035 = vmul.f32 %v1027, %v1027
      %v1036 = vmul.f32 %v1028, %v1028
      %v1037 = vmul.f32 %v1029, %v1029
      %v1038 = vmul.f32 %v1030, %v1030
      %v1039 = vmul.f32 %v1031, %v1031
      %v1040 = vadd.f32 %v1032, %v1033
      %v1041 = vadd.f32 %v1040, %v1034
      %v1042 = vadd.f32 %v1041, %v1035
      %v1043 = vadd.f32 %v1042, %v1036
      %v1044 = vadd.f32 %v1043, %v1037
      %v1045 = vadd.f32 %v1044, %v1038
      %v1046 = vadd.f32 %v1045, %v1039
      %1047 = vadd.xlane.f32.xlu0 %v1046
      %v1048 = vpop.xlane.xlu0 %1047
      %v1049 = vrot.slane %v1048, 4
      %v1050 = vadd.f32 %v1048, %v1049
      %v1051 = vrot.slane %v1050, 2
      %v1052 = vadd.f32 %v1050, %v1051
      %v1053 = vrot.slane %v1052, 1
      %v1054 = vadd.f32 %v1052, %v1053
      %s1055 = vtos %v1054
      %v1056 = vstv %s1055
      %vm1057 = vcmask 0
      %1058 = vst.msk [vmem:[%s328] sm:$0x1] %vm1057, %v1056
      %s1059 = smul.u32 2, %s23
      %p1060 = scmp.lt.s32.totalorder %s22, 1
      %s1061 = scalar_select %p1060, %s22, 1
      %p1062 = scmp.lt.s32.totalorder %s1059, 1
      %s1063 = scalar_select %p1062, %s1059, 1
      %s1064 = smul.addr %s1061, 8
      %s1065 = sadd.s32 %s1063, %s1064
      %s1066 = smul.addr %s1065, 8
      %s1067 = scalar_lea.vmem %s4, %s1066
      %s1068 = smul.u32 2, %s23
      %p1069 = scmp.lt.s32.totalorder %s22, 1
      %s1070 = scalar_select %p1069, %s22, 1
      %p1071 = scmp.lt.s32.totalorder %s1068, 1
      %s1072 = scalar_select %p1071, %s1068, 1
      %s1073 = smul.addr %s1070, 2
      %s1074 = sadd.s32 %s1072, %s1073
      %s1075 = scalar_lea.vmem %s5, %s1074
      %p1076 = scmp.lt.s32.totalorder %s22, 1
      %s1077 = scalar_select %p1076, %s22, 1
      %p1078 = scmp.lt.s32.totalorder %s23, 0
      %s1079 = scalar_select %p1078, %s23, 0
      %s1080 = sadd.s32 %s1079, %s1077
      %s1081 = scalar_lea.vmem %s6, %s1080
      // Predicated region
      $region37: #{vq_forward.1} parent=35 // pred_check
        %p1082 = pneg %p141
      $region38: #{vq_forward.1} parent=35 // pred_check_branch
        %1084 = sbr.rel (%p1082) target = $region40
      $region39: #{vq_forward.1} parent=35 // pred_region
        %s1085 = smul.u32 2, %s23
      $region40: #{vq_forward.1} parent=35 // pred_fallthru
        _
      // Predicated region
      $region41: #{vq_forward.1} parent=35 // pred_check
        %p1086 = pneg %p169
      $region42: #{vq_forward.1} parent=35 // pred_check_branch
        %1088 = sbr.rel (%p1086) target = $region44
      $region43: #{vq_forward.1} parent=35 // pred_region
        %s1089 = smul.u32 2, %s23
      $region44: #{vq_forward.1} parent=35 // pred_fallthru
        _
      // Predicated region
      $region45: #{vq_forward.1} parent=35 // pred_check
        %p1090 = pneg %p197
      $region46: #{vq_forward.1} parent=35 // pred_check_branch
        %1092 = sbr.rel (%p1090) target = $region48
      $region47: #{vq_forward.1} parent=35 // pred_region
        _
      $region48: #{vq_forward.1} parent=35 // pred_fallthru
        _
    $region36: #{vq_forward.1} parent=5 // pred_fallthru
      _
    %p1093 = scmp.le.s32.totalorder 2, %s13
    // Predicated region
    $region49: #{vq_forward.1} parent=5 // pred_check
      %p1094 = pneg %p1093
    $region50: #{vq_forward.1} parent=5 // pred_check_branch
      %1096 = sbr.rel (%p1094) target = $region52
    $region51: #{vq_forward.1} parent=5 // pred_region
      %s1097 = ssub.s32 %s13, 2
      // Predicated region
      $region53: #{vq_forward.1} parent=51 // pred_check
        %p1098 = pneg %p147
      $region54: #{vq_forward.1} parent=51 // pred_check_branch
        %1100 = sbr.rel (%p1098) target = $region56
      $region55: #{vq_forward.1} parent=51 // pred_region
        %s1101 = smul.u32 2, %s25
        %p1102 = scmp.lt.s32.totalorder %s24, 1
        %s1103 = scalar_select %p1102, %s24, 1
        %p1104 = scmp.lt.s32.totalorder %s1101, 1
        %s1105 = scalar_select %p1104, %s1101, 1
        %s1106 = smul.addr %s1103, 8
        %s1107 = sadd.s32 %s1105, %s1106
        %s1108 = smul.addr %s1107, 8
        %s1109 = scalar_lea.vmem %s4, %s1108
      $region56: #{vq_forward.1} parent=51 // pred_fallthru
        _
      // Predicated region
      $region57: #{vq_forward.1} parent=51 // pred_check
        %p1110 = pneg %p175
      $region58: #{vq_forward.1} parent=51 // pred_check_branch
        %1112 = sbr.rel (%p1110) target = $region60
      $region59: #{vq_forward.1} parent=51 // pred_region
        %s1113 = smul.u32 2, %s25
        %p1114 = scmp.lt.s32.totalorder %s24, 1
        %s1115 = scalar_select %p1114, %s24, 1
        %p1116 = scmp.lt.s32.totalorder %s1113, 1
        %s1117 = scalar_select %p1116, %s1113, 1
        %s1118 = smul.addr %s1115, 2
        %s1119 = sadd.s32 %s1117, %s1118
        %s1120 = scalar_lea.vmem %s5, %s1119
      $region60: #{vq_forward.1} parent=51 // pred_fallthru
        _
      // Predicated region
      $region61: #{vq_forward.1} parent=51 // pred_check
        %p1121 = pneg %p203
      $region62: #{vq_forward.1} parent=51 // pred_check_branch
        %1123 = sbr.rel (%p1121) target = $region64
      $region63: #{vq_forward.1} parent=51 // pred_region
        %p1124 = scmp.lt.s32.totalorder %s24, 1
        %s1125 = scalar_select %p1124, %s24, 1
        %p1126 = scmp.lt.s32.totalorder %s25, 0
        %s1127 = scalar_select %p1126, %s25, 0
        %s1128 = sadd.s32 %s1127, %s1125
        %s1129 = scalar_lea.vmem %s6, %s1128
      $region64: #{vq_forward.1} parent=51 // pred_fallthru
        _
    $region52: #{vq_forward.1} parent=5 // pred_fallthru
      _
  $region6: #{vq_forward.1} parent=0 // loop_footer
    %s17 = sadd.s32 1, %s13
  $region7: #{vq_forward.1} parent=0 // loop_footer_branch
    %12 = sbr.rel target = $region3
  $region8: #{vq_forward.1} parent=0 // loop_exit
    _

</llo_original>
